<compile_context>
chip_gen: v5e
topology: v5e:2x2
jax: 0.10.0
libtpu: 0.0.40
codegen_flags: <defaults>
</compile_context>

<pallas_src>
import math
import jax
import jax.numpy as jnp
import numpy as np
from jax.experimental import pallas as pl
from jax.experimental.pallas import tpu as pltpu

# Architecture: dimensions = [D_in, H0, H1, L]
DIMS = [128, 64, 32, 16]
BATCH = 8

D_PAD = 128                        # padded feature width (lane axis)
LAT = DIMS[-1]
D_IN = DIMS[0]
N_ENC = len(DIMS) - 2              # encoder hidden Linear+ReLU layers
IDX_HEAD = N_ENC                   # fused [mu | log_var] head
IDX_DEC0 = IDX_HEAD + 1            # first decoder hidden layer
N_DEC = len(DIMS) - 2              # decoder hidden Linear+ReLU layers
IDX_REC = IDX_DEC0 + N_DEC         # reconstruction layer
N_LAYERS = IDX_REC + 1
assert max(DIMS) <= D_PAD and 3 * LAT <= D_PAD


def vae_kernel(x_ref, eps_ref, w_ref, b_ref, xmu_ref, lat_ref):
    """One batch tile of the full VAE forward.

    x_ref, eps_ref : (TM, D_PAD)   activations / noise (zero-padded lanes)
    w_ref          : (N_LAYERS, D_PAD, D_PAD) zero-padded stacked weights
    b_ref          : (N_LAYERS, 1, D_PAD)     zero-padded stacked biases
    xmu_ref        : (TM, D_PAD)   reconstruction (dense lanes)
    lat_ref        : (TM, D_PAD)   [ z | mu | log_var | 0... ] packed slab
    """
    f32 = jnp.float32
    h = x_ref[...]

    # --- Encoder hidden stack (Linear -> ReLU); padded lanes remain 0 ---
    for k in range(N_ENC):
        h = jnp.maximum(
            jnp.dot(h, w_ref[k], preferred_element_type=f32) + b_ref[k], 0.0)

    # --- Fused GaussianSampling heads: one matmul -> [mu | log_var | 0] ---
    heads = (jnp.dot(h, w_ref[IDX_HEAD], preferred_element_type=f32)
             + b_ref[IDX_HEAD])
    mu = heads[:, 0:LAT]
    log_var = heads[:, LAT:2 * LAT]

    # --- Reparameterization: z = mu + exp(log_var / 2) * eps ---
    z = mu + jnp.exp(log_var * 0.5) * eps_ref[:, 0:LAT]

    # --- Pack latent outputs into one lane-dense slab [z | mu | log_var | 0] ---
    lat_ref[...] = jnp.zeros(lat_ref.shape, f32)
    lat_ref[:, 0:LAT] = z
    lat_ref[:, LAT:2 * LAT] = mu
    lat_ref[:, 2 * LAT:3 * LAT] = log_var

    # --- Decoder hidden stack (Linear -> ReLU) ---
    # The first decoder weight's padded rows (>= LAT) are zero, so the mu /
    # log_var lanes sitting next to z in the slab contribute nothing.
    d = lat_ref[...]
    for k in range(IDX_DEC0, IDX_DEC0 + N_DEC):
        d = jnp.maximum(
            jnp.dot(d, w_ref[k], preferred_element_type=f32) + b_ref[k], 0.0)

    # --- Reconstruction layer; decoder_final_activation == '' => identity ---
    xmu_ref[...] = (jnp.dot(d, w_ref[IDX_REC], preferred_element_type=f32)
                    + b_ref[IDX_REC])


def _flops_per_row(dims):
    lat = dims[-1]
    shapes = [(dims[i], dims[i + 1]) for i in range(len(dims) - 2)]
    shapes.append((dims[-2], 2 * lat))                      # fused heads
    r = list(reversed(dims))
    shapes += [(r[i], r[i + 1]) for i in range(len(r) - 2)]
    shapes.append((r[-2], r[-1]))                           # reconstruction
    return 2 * sum(a * b for a, b in shapes)


_FLOPS_PER_ROW = _flops_per_row(DIMS)


def vae_forward(x, eps, w_stack, b_stack, *, tm=None):
    """Runs the packed-parameter VAE Pallas kernel and unpacks the outputs."""
    B, d_in = x.shape
    lat = eps.shape[1]
    if d_in < D_PAD:
        x = jnp.pad(x, ((0, 0), (0, D_PAD - d_in)))
    eps_p = jnp.pad(eps, ((0, 0), (0, D_PAD - lat)))

    if tm is None:
        # Small batches: single tile.  Large batches: 256-row tiles (multiple
        # of the v6e/v7x 256-wide MXU and of v5e's 128), "parallel" over grid.
        tm = B if B <= 256 else 256
    grid = (pl.cdiv(B, tm),)

    act_spec = pl.BlockSpec((tm, D_PAD), lambda i: (i, 0))
    w_spec = pl.BlockSpec(w_stack.shape, lambda i: (0, 0, 0))  # resident
    b_spec = pl.BlockSpec(b_stack.shape, lambda i: (0, 0, 0))  # resident

    param_bytes = (w_stack.size * w_stack.dtype.itemsize
                   + b_stack.size * b_stack.dtype.itemsize)
    io_bytes = 4 * B * D_PAD * 4            # x, eps, x_mu, latent slab (f32)
    cost = pl.CostEstimate(
        flops=int(_FLOPS_PER_ROW * B),
        transcendentals=int(B * lat),
        bytes_accessed=int(param_bytes + io_bytes))

    out_shapes = (
        jax.ShapeDtypeStruct((B, D_PAD), jnp.float32),   # x_mu (padded width)
        jax.ShapeDtypeStruct((B, D_PAD), jnp.float32),   # [z | mu | log_var | 0]
    )
    xmu_pad, lat_slab = pl.pallas_call(
        vae_kernel,
        out_shape=out_shapes,
        grid=grid,
        in_specs=[act_spec, act_spec, w_spec, b_spec],
        out_specs=(act_spec, act_spec),
        compiler_params=pltpu.CompilerParams(
            dimension_semantics=("parallel",)),
        cost_estimate=cost,
    )(x, eps_p, w_stack, b_stack)

    x_mu = xmu_pad[:, :d_in]
    z = lat_slab[:, :lat]
    mu = lat_slab[:, lat:2 * lat]
    log_var = lat_slab[:, 2 * lat:3 * lat]
    return x_mu, z, mu, log_var


# ----------------------------- parameters -----------------------------------

def xavier_normal(key, fan_in, fan_out):
    std = math.sqrt(2.0 / (fan_in + fan_out))
    return jax.random.normal(key, (fan_in, fan_out), dtype=jnp.float32) * std


def init_params(key, dims):
    d_in, h0, h1, lat = dims
    keys = jax.random.split(key, 7)
    p = {}
    # Encoder: d_in -> h0 -> h1, then mu/log_var heads h1 -> lat
    p["we0"], p["be0"] = xavier_normal(keys[0], d_in, h0), jnp.zeros((1, h0), jnp.float32)
    p["we1"], p["be1"] = xavier_normal(keys[1], h0, h1), jnp.zeros((1, h1), jnp.float32)
    p["wmu"], p["bmu"] = xavier_normal(keys[2], h1, lat), jnp.zeros((1, lat), jnp.float32)
    p["wlv"], p["blv"] = xavier_normal(keys[3], h1, lat), jnp.zeros((1, lat), jnp.float32)
    # Decoder (reversed dims): lat -> h1 -> h0, reconstruction h0 -> d_in
    p["wd0"], p["bd0"] = xavier_normal(keys[4], lat, h1), jnp.zeros((1, h1), jnp.float32)
    p["wd1"], p["bd1"] = xavier_normal(keys[5], h1, h0), jnp.zeros((1, h0), jnp.float32)
    p["wrec"], p["brec"] = xavier_normal(keys[6], h0, d_in), jnp.zeros((1, d_in), jnp.float32)
    return p


def pack_params(p, dims):
    """Zero-pad every layer to (D_PAD, D_PAD) and stack into two slabs."""
    layers = []
    for i in range(len(dims) - 2):                       # encoder hidden
        layers.append((p[f"we{i}"], p[f"be{i}"]))
    # fused GaussianSampling head: [W_mu | W_logvar]
    layers.append((jnp.concatenate([p["wmu"], p["wlv"]], axis=1),
                   jnp.concatenate([p["bmu"], p["blv"]], axis=1)))
    for i in range(len(dims) - 2):                       # decoder hidden
        layers.append((p[f"wd{i}"], p[f"bd{i}"]))
    layers.append((p["wrec"], p["brec"]))                # reconstruction
    assert len(layers) == N_LAYERS

    w_stack = jnp.stack([
        jnp.zeros((D_PAD, D_PAD), jnp.float32).at[:w.shape[0], :w.shape[1]].set(w)
        for w, _ in layers])
    b_stack = jnp.stack([
        jnp.zeros((1, D_PAD), jnp.float32).at[:, :b.shape[1]].set(b)
        for _, b in layers])
    return w_stack, b_stack


# ----------------------------- reference -------------------------------------

def vae_forward_ref(x, eps, p):
    """Pure-JAX reference for correctness check (uses the raw parameters)."""
    h = jnp.maximum(x @ p["we0"] + p["be0"], 0.0)
    h = jnp.maximum(h @ p["we1"] + p["be1"], 0.0)
    mu = h @ p["wmu"] + p["bmu"]
    lv = h @ p["wlv"] + p["blv"]
    z = mu + jnp.exp(lv * 0.5) * eps
    d = jnp.maximum(z @ p["wd0"] + p["bd0"], 0.0)
    d = jnp.maximum(d @ p["wd1"] + p["bd1"], 0.0)
    x_mu = d @ p["wrec"] + p["brec"]
    return x_mu, z, mu, lv


if __name__ == "__main__":
    key = jax.random.PRNGKey(0)
    k_x, k_eps, k_par = jax.random.split(key, 3)

    d_in, lat = DIMS[0], DIMS[-1]
    x = jax.random.normal(k_x, (BATCH, d_in), dtype=jnp.float32)
    # epsilon ~ N(0, I), generated deterministically outside the kernel
    eps = jax.random.normal(k_eps, (BATCH, lat), dtype=jnp.float32)
    params = init_params(k_par, DIMS)
    w_stack, b_stack = pack_params(params, DIMS)

    fwd = jax.jit(vae_forward)
    x_mu, z, mu, log_var = jax.block_until_ready(fwd(x, eps, w_stack, b_stack))

    # correctness check against pure-JAX reference
    r_xmu, r_z, r_mu, r_lv = vae_forward_ref(x, eps, params)
    np.testing.assert_allclose(np.asarray(x_mu), np.asarray(r_xmu), rtol=1e-5, atol=1e-5)
    np.testing.assert_allclose(np.asarray(z), np.asarray(r_z), rtol=1e-5, atol=1e-5)
    np.testing.assert_allclose(np.asarray(mu), np.asarray(r_mu), rtol=1e-5, atol=1e-5)
    np.testing.assert_allclose(np.asarray(log_var), np.asarray(r_lv), rtol=1e-5, atol=1e-5)

    print("KERNEL_OK")
</pallas_src>

<mosaic_0001>
module attributes {stable_mosaic.version = 11 : i64} {
  func.func @vae_kernel(%arg0: i32, %arg1: memref<8x128xf32, #tpu.memory_space<vmem>>, %arg2: memref<8x128xf32, #tpu.memory_space<vmem>>, %arg3: memref<6x128x128xf32, #tpu.memory_space<vmem>>, %arg4: memref<6x1x128xf32, #tpu.memory_space<vmem>>, %arg5: memref<8x128xf32, #tpu.memory_space<vmem>>, %arg6: memref<8x128xf32, #tpu.memory_space<vmem>>) attributes {dimension_semantics = [#tpu.dimension_semantics<parallel>], iteration_bounds = array<i64: 1>, scalar_prefetch = 0 : i64, scratch_operands = 0 : i64, tpu.core_type = #tpu.core_type<tc>, window_params = [{transform_indices = @transform_0, window_bounds = array<i64: 8, 128>}, {transform_indices = @transform_1, window_bounds = array<i64: 8, 128>}, {pipeline_mode = #tpu.pipeline_mode<synchronous>, transform_indices = @transform_2, window_bounds = array<i64: 6, 128, 128>}, {pipeline_mode = #tpu.pipeline_mode<synchronous>, transform_indices = @transform_3, window_bounds = array<i64: 6, 1, 128>}, {transform_indices = @transform_4, window_bounds = array<i64: 8, 128>}, {transform_indices = @transform_5, window_bounds = array<i64: 8, 128>}]} {
    %c0 = arith.constant 0 : index
    %c0_0 = arith.constant 0 : index
    %0 = vector.load %arg1[%c0, %c0_0] : memref<8x128xf32, #tpu.memory_space<vmem>>, vector<8x128xf32>
    %c0_1 = arith.constant 0 : index
    %c0_2 = arith.constant 0 : index
    %c0_3 = arith.constant 0 : index
    %1 = vector.load %arg3[%c0_1, %c0_2, %c0_3] : memref<6x128x128xf32, #tpu.memory_space<vmem>>, vector<1x128x128xf32>
    %2 = vector.shape_cast %1 : vector<1x128x128xf32> to vector<128x128xf32>
    %cst = arith.constant dense<0.000000e+00> : vector<8x128xf32>
    %3 = tpu.matmul %0, %2, %cst {dimension_numbers = #tpu.dot_dimension_numbers<[1], [0], [0], [1], [0, 0, 1, 1], [], []>} : vector<8x128xf32>, vector<128x128xf32>, vector<8x128xf32> -> vector<8x128xf32>
    %c0_4 = arith.constant 0 : index
    %c0_5 = arith.constant 0 : index
    %c0_6 = arith.constant 0 : index
    %4 = vector.load %arg4[%c0_4, %c0_5, %c0_6] : memref<6x1x128xf32, #tpu.memory_space<vmem>>, vector<1x1x128xf32>
    %5 = vector.shape_cast %4 : vector<1x1x128xf32> to vector<1x128xf32>
    %6 = vector.broadcast %5 : vector<1x128xf32> to vector<8x128xf32>
    %7 = arith.addf %3, %6 : vector<8x128xf32>
    %cst_7 = arith.constant 0.000000e+00 : f32
    %8 = vector.broadcast %cst_7 : f32 to vector<8x128xf32>
    %9 = arith.maximumf %7, %8 : vector<8x128xf32>
    %c1 = arith.constant 1 : index
    %c0_8 = arith.constant 0 : index
    %c0_9 = arith.constant 0 : index
    %10 = vector.load %arg3[%c1, %c0_8, %c0_9] : memref<6x128x128xf32, #tpu.memory_space<vmem>>, vector<1x128x128xf32>
    %11 = vector.shape_cast %10 : vector<1x128x128xf32> to vector<128x128xf32>
    %cst_10 = arith.constant dense<0.000000e+00> : vector<8x128xf32>
    %12 = tpu.matmul %9, %11, %cst_10 {dimension_numbers = #tpu.dot_dimension_numbers<[1], [0], [0], [1], [0, 0, 1, 1], [], []>} : vector<8x128xf32>, vector<128x128xf32>, vector<8x128xf32> -> vector<8x128xf32>
    %c1_11 = arith.constant 1 : index
    %c0_12 = arith.constant 0 : index
    %c0_13 = arith.constant 0 : index
    %13 = vector.load %arg4[%c1_11, %c0_12, %c0_13] : memref<6x1x128xf32, #tpu.memory_space<vmem>>, vector<1x1x128xf32>
    %14 = vector.shape_cast %13 : vector<1x1x128xf32> to vector<1x128xf32>
    %15 = vector.broadcast %14 : vector<1x128xf32> to vector<8x128xf32>
    %16 = arith.addf %12, %15 : vector<8x128xf32>
    %cst_14 = arith.constant 0.000000e+00 : f32
    %17 = vector.broadcast %cst_14 : f32 to vector<8x128xf32>
    %18 = arith.maximumf %16, %17 : vector<8x128xf32>
    %c2 = arith.constant 2 : index
    %c0_15 = arith.constant 0 : index
    %c0_16 = arith.constant 0 : index
    %19 = vector.load %arg3[%c2, %c0_15, %c0_16] : memref<6x128x128xf32, #tpu.memory_space<vmem>>, vector<1x128x128xf32>
    %20 = vector.shape_cast %19 : vector<1x128x128xf32> to vector<128x128xf32>
    %cst_17 = arith.constant dense<0.000000e+00> : vector<8x128xf32>
    %21 = tpu.matmul %18, %20, %cst_17 {dimension_numbers = #tpu.dot_dimension_numbers<[1], [0], [0], [1], [0, 0, 1, 1], [], []>} : vector<8x128xf32>, vector<128x128xf32>, vector<8x128xf32> -> vector<8x128xf32>
    %c2_18 = arith.constant 2 : index
    %c0_19 = arith.constant 0 : index
    %c0_20 = arith.constant 0 : index
    %22 = vector.load %arg4[%c2_18, %c0_19, %c0_20] : memref<6x1x128xf32, #tpu.memory_space<vmem>>, vector<1x1x128xf32>
    %23 = vector.shape_cast %22 : vector<1x1x128xf32> to vector<1x128xf32>
    %24 = vector.broadcast %23 : vector<1x128xf32> to vector<8x128xf32>
    %25 = arith.addf %21, %24 : vector<8x128xf32>
    %26 = vector.extract_strided_slice %25 {offsets = [0, 0], sizes = [8, 16], strides = [1, 1]} : vector<8x128xf32> to vector<8x16xf32>
    %27 = vector.extract_strided_slice %25 {offsets = [0, 16], sizes = [8, 16], strides = [1, 1]} : vector<8x128xf32> to vector<8x16xf32>
    %cst_21 = arith.constant 5.000000e-01 : f32
    %28 = vector.broadcast %cst_21 : f32 to vector<8x16xf32>
    %29 = arith.mulf %27, %28 : vector<8x16xf32>
    %30 = math.exp %29 : vector<8x16xf32>
    %c0_22 = arith.constant 0 : index
    %c0_23 = arith.constant 0 : index
    %31 = vector.load %arg2[%c0_22, %c0_23] : memref<8x128xf32, #tpu.memory_space<vmem>>, vector<8x16xf32>
    %32 = arith.mulf %30, %31 : vector<8x16xf32>
    %33 = arith.addf %26, %32 : vector<8x16xf32>
    %cst_24 = arith.constant 0.000000e+00 : f32
    %34 = vector.broadcast %cst_24 : f32 to vector<8x128xf32>
    %c0_25 = arith.constant 0 : index
    %c0_26 = arith.constant 0 : index
    %35 = vector.load %arg6[%c0_25, %c0_26] : memref<8x128xf32, #tpu.memory_space<vmem>>, vector<8x128xf32>
    tpu.vector_store %arg6[%c0_25, %c0_26], %34 {strides = array<i32>} : memref<8x128xf32, #tpu.memory_space<vmem>>, vector<8x128xf32>,
    %c0_27 = arith.constant 0 : index
    %c0_28 = arith.constant 0 : index
    %36 = vector.load %arg6[%c0_27, %c0_28] : memref<8x128xf32, #tpu.memory_space<vmem>>, vector<8x16xf32>
    tpu.vector_store %arg6[%c0_27, %c0_28], %33 {strides = array<i32>} : memref<8x128xf32, #tpu.memory_space<vmem>>, vector<8x16xf32>,
    %c0_29 = arith.constant 0 : index
    %c16 = arith.constant 16 : index
    %37 = vector.load %arg6[%c0_29, %c16] : memref<8x128xf32, #tpu.memory_space<vmem>>, vector<8x16xf32>
    tpu.vector_store %arg6[%c0_29, %c16], %26 {strides = array<i32>} : memref<8x128xf32, #tpu.memory_space<vmem>>, vector<8x16xf32>,
    %c0_30 = arith.constant 0 : index
    %c32 = arith.constant 32 : index
    %38 = vector.load %arg6[%c0_30, %c32] : memref<8x128xf32, #tpu.memory_space<vmem>>, vector<8x16xf32>
    tpu.vector_store %arg6[%c0_30, %c32], %27 {strides = array<i32>} : memref<8x128xf32, #tpu.memory_space<vmem>>, vector<8x16xf32>,
    %c0_31 = arith.constant 0 : index
    %c0_32 = arith.constant 0 : index
    %39 = vector.load %arg6[%c0_31, %c0_32] : memref<8x128xf32, #tpu.memory_space<vmem>>, vector<8x128xf32>
    %c3 = arith.constant 3 : index
    %c0_33 = arith.constant 0 : index
    %c0_34 = arith.constant 0 : index
    %40 = vector.load %arg3[%c3, %c0_33, %c0_34] : memref<6x128x128xf32, #tpu.memory_space<vmem>>, vector<1x128x128xf32>
    %41 = vector.shape_cast %40 : vector<1x128x128xf32> to vector<128x128xf32>
    %cst_35 = arith.constant dense<0.000000e+00> : vector<8x128xf32>
    %42 = tpu.matmul %39, %41, %cst_35 {dimension_numbers = #tpu.dot_dimension_numbers<[1], [0], [0], [1], [0, 0, 1, 1], [], []>} : vector<8x128xf32>, vector<128x128xf32>, vector<8x128xf32> -> vector<8x128xf32>
    %c3_36 = arith.constant 3 : index
    %c0_37 = arith.constant 0 : index
    %c0_38 = arith.constant 0 : index
    %43 = vector.load %arg4[%c3_36, %c0_37, %c0_38] : memref<6x1x128xf32, #tpu.memory_space<vmem>>, vector<1x1x128xf32>
    %44 = vector.shape_cast %43 : vector<1x1x128xf32> to vector<1x128xf32>
    %45 = vector.broadcast %44 : vector<1x128xf32> to vector<8x128xf32>
    %46 = arith.addf %42, %45 : vector<8x128xf32>
    %cst_39 = arith.constant 0.000000e+00 : f32
    %47 = vector.broadcast %cst_39 : f32 to vector<8x128xf32>
    %48 = arith.maximumf %46, %47 : vector<8x128xf32>
    %c4 = arith.constant 4 : index
    %c0_40 = arith.constant 0 : index
    %c0_41 = arith.constant 0 : index
    %49 = vector.load %arg3[%c4, %c0_40, %c0_41] : memref<6x128x128xf32, #tpu.memory_space<vmem>>, vector<1x128x128xf32>
    %50 = vector.shape_cast %49 : vector<1x128x128xf32> to vector<128x128xf32>
    %cst_42 = arith.constant dense<0.000000e+00> : vector<8x128xf32>
    %51 = tpu.matmul %48, %50, %cst_42 {dimension_numbers = #tpu.dot_dimension_numbers<[1], [0], [0], [1], [0, 0, 1, 1], [], []>} : vector<8x128xf32>, vector<128x128xf32>, vector<8x128xf32> -> vector<8x128xf32>
    %c4_43 = arith.constant 4 : index
    %c0_44 = arith.constant 0 : index
    %c0_45 = arith.constant 0 : index
    %52 = vector.load %arg4[%c4_43, %c0_44, %c0_45] : memref<6x1x128xf32, #tpu.memory_space<vmem>>, vector<1x1x128xf32>
    %53 = vector.shape_cast %52 : vector<1x1x128xf32> to vector<1x128xf32>
    %54 = vector.broadcast %53 : vector<1x128xf32> to vector<8x128xf32>
    %55 = arith.addf %51, %54 : vector<8x128xf32>
    %cst_46 = arith.constant 0.000000e+00 : f32
    %56 = vector.broadcast %cst_46 : f32 to vector<8x128xf32>
    %57 = arith.maximumf %55, %56 : vector<8x128xf32>
    %c5 = arith.constant 5 : index
    %c0_47 = arith.constant 0 : index
    %c0_48 = arith.constant 0 : index
    %58 = vector.load %arg3[%c5, %c0_47, %c0_48] : memref<6x128x128xf32, #tpu.memory_space<vmem>>, vector<1x128x128xf32>
    %59 = vector.shape_cast %58 : vector<1x128x128xf32> to vector<128x128xf32>
    %cst_49 = arith.constant dense<0.000000e+00> : vector<8x128xf32>
    %60 = tpu.matmul %57, %59, %cst_49 {dimension_numbers = #tpu.dot_dimension_numbers<[1], [0], [0], [1], [0, 0, 1, 1], [], []>} : vector<8x128xf32>, vector<128x128xf32>, vector<8x128xf32> -> vector<8x128xf32>
    %c5_50 = arith.constant 5 : index
    %c0_51 = arith.constant 0 : index
    %c0_52 = arith.constant 0 : index
    %61 = vector.load %arg4[%c5_50, %c0_51, %c0_52] : memref<6x1x128xf32, #tpu.memory_space<vmem>>, vector<1x1x128xf32>
    %62 = vector.shape_cast %61 : vector<1x1x128xf32> to vector<1x128xf32>
    %63 = vector.broadcast %62 : vector<1x128xf32> to vector<8x128xf32>
    %64 = arith.addf %60, %63 : vector<8x128xf32>
    %c0_53 = arith.constant 0 : index
    %c0_54 = arith.constant 0 : index
    %65 = vector.load %arg5[%c0_53, %c0_54] : memref<8x128xf32, #tpu.memory_space<vmem>>, vector<8x128xf32>
    tpu.vector_store %arg5[%c0_53, %c0_54], %64 {strides = array<i32>} : memref<8x128xf32, #tpu.memory_space<vmem>>, vector<8x128xf32>,
    return
  }
  func.func @transform_0(%arg0: i32) -> (i32, i32) {
    %c0_i32 = arith.constant 0 : i32
    %c0_i32_0 = arith.constant 0 : i32
    return %arg0, %c0_i32 : i32, i32
  }
  func.func @transform_1(%arg0: i32) -> (i32, i32) {
    %c0_i32 = arith.constant 0 : i32
    %c0_i32_0 = arith.constant 0 : i32
    return %arg0, %c0_i32 : i32, i32
  }
  func.func @transform_2(%arg0: i32) -> (i32, i32, i32) {
    %c0_i32 = arith.constant 0 : i32
    %c0_i32_0 = arith.constant 0 : i32
    %c0_i32_1 = arith.constant 0 : i32
    %c0_i32_2 = arith.constant 0 : i32
    return %c0_i32, %c0_i32_0, %c0_i32_1 : i32, i32, i32
  }
  func.func @transform_3(%arg0: i32) -> (i32, i32, i32) {
    %c0_i32 = arith.constant 0 : i32
    %c0_i32_0 = arith.constant 0 : i32
    %c0_i32_1 = arith.constant 0 : i32
    %c0_i32_2 = arith.constant 0 : i32
    return %c0_i32, %c0_i32_0, %c0_i32_1 : i32, i32, i32
  }
  func.func @transform_4(%arg0: i32) -> (i32, i32) {
    %c0_i32 = arith.constant 0 : i32
    %c0_i32_0 = arith.constant 0 : i32
    return %arg0, %c0_i32 : i32, i32
  }
  func.func @transform_5(%arg0: i32) -> (i32, i32) {
    %c0_i32 = arith.constant 0 : i32
    %c0_i32_0 = arith.constant 0 : i32
    return %arg0, %c0_i32 : i32, i32
  }
}

</mosaic_0001>

<llo_original>
// kernel: vae_forward.1
$region0: #{vae_forward.1}
  #allocation0 [shape = 'u32[]', space=smem, size = 0x4, offset = 0x4, fixed_abs, tag = 'smem constant byte address 0x4 - core index']
  #allocation1 [shape = 'u32[72,128]{1,0:T(1,128)}', space=vmem, size = 0x9000, scoped, tag = 'internal scratch']
  %s0 = inlined_call_operand.vmem [shape: f32[8,128], index: 0, kind: input, shape index: {}]
  %s1 = inlined_call_operand.vmem [shape: f32[8,128], index: 1, kind: input, shape index: {}]
  %s2 = inlined_call_operand.hbm [shape: f32[6,128,128], index: 2, kind: input, shape index: {}]
  %s3 = inlined_call_operand.vmem [shape: f32[6,1,128], index: 3, kind: input, shape index: {}]
  %s4 = inlined_call_operand.hbm [shape: f32[8,128], index: 4, kind: output, shape index: {0}]
  %s5 = inlined_call_operand.vmem [shape: f32[8,128], index: 5, kind: output, shape index: {1}]
  %6 = xla_tuple %s4, %s5
  %s7 = sld [smem:[#allocation0]]
  $region38: #{vae_forward.1} parent=0
    _
  %s9 = ssub.s32 1, %s7
  %s10 = scalar_select 0, %s9, %s7
  $region1: #{vae_forward.1} parent=0
    #allocation2 [shape = 'u8[393216]{0}', space=vmem, size = 0x60000, scoped, tag = 'input window, operand 2, single buffered']
    #allocation3 [shape = 's32[1]{0}', space=sflag, size = 0x4, scoped, tag = 'scoped memory for vae_forward.1']
    #allocation4 [shape = 's32[1]{0}', space=sflag, size = 0x4, scoped, tag = 'scoped memory for vae_forward.1']
    #allocation5 [shape = 'u8[4096]{0}', space=vmem, size = 0x1000, scoped, tag = 'output window, operand 0, single buffered']
    %11 = vsyncpa [#allocation3], 0
    %12 = vsyncpa [#allocation4], 0
    // Predicated region
    $region2: #{vae_forward.1} parent=1 // pred_check
      _
    $region3: #{vae_forward.1} parent=1 // pred_check_branch
      %14 = sbr.rel (0) target = $region5
    $region4: #{vae_forward.1} parent=1 // pred_region
      _
    $region5: #{vae_forward.1} parent=1 // pred_fallthru
      _
    // Predicated region
    $region6: #{vae_forward.1} parent=1 // pred_check
      _
    $region7: #{vae_forward.1} parent=1 // pred_check_branch
      %16 = sbr.rel (0) target = $region9
    $region8: #{vae_forward.1} parent=1 // pred_region
      _
    $region9: #{vae_forward.1} parent=1 // pred_fallthru
      _
    // Predicated region
    $region10: #{vae_forward.1} parent=1 // pred_check
      _
    $region11: #{vae_forward.1} parent=1 // pred_check_branch
      %18 = sbr.rel (0) target = $region13
    $region12: #{vae_forward.1} parent=1 // pred_region
      %20 = vsyncadd [#allocation3], 0
      %s21 = sshll.u32 %s2, 4
      %s22 = int_to_ptr.hbm [resolvable:$true] %s21
      %s23 = sshll.u32 [#allocation2], 4
      %s24 = int_to_ptr.vmem [resolvable:$true] %s23
      %29 = dma.hbm_to_vmem [thread:$0]  %s22, 12288, %s24, [#allocation3], 128, 128, 8
    $region13: #{vae_forward.1} parent=1 // pred_fallthru
      _
    // Predicated region
    $region14: #{vae_forward.1} parent=1 // pred_check
      _
    $region15: #{vae_forward.1} parent=1 // pred_check_branch
      %31 = sbr.rel (0) target = $region17
    $region16: #{vae_forward.1} parent=1 // pred_region
      _
    $region17: #{vae_forward.1} parent=1 // pred_fallthru
      _
    // Predicated region
    $region18: #{vae_forward.1} parent=1 // pred_check
      _
    $region19: #{vae_forward.1} parent=1 // pred_check_branch
      %33 = sbr.rel (0) target = $region21
    $region20: #{vae_forward.1} parent=1 // pred_region
      %35 = dma.done [#allocation3], 12288
    $region21: #{vae_forward.1} parent=1 // pred_fallthru
      _
    %v36 = vld [vmem:[%s0] sm:$0xff]
    %v37 = vld [vmem:[#allocation2] sm:$0xff]
    %v38 = vld [vmem:[#allocation2 + $0x8] sm:$0xff]
    %v39 = vld [vmem:[#allocation2 + $0x10] sm:$0xff]
    %v40 = vld [vmem:[#allocation2 + $0x18] sm:$0xff]
    %v41 = vld [vmem:[#allocation2 + $0x20] sm:$0xff]
    %v42 = vld [vmem:[#allocation2 + $0x28] sm:$0xff]
    %v43 = vld [vmem:[#allocation2 + $0x30] sm:$0xff]
    %v44 = vld [vmem:[#allocation2 + $0x38] sm:$0xff]
    %v45 = vld [vmem:[#allocation2 + $0x40] sm:$0xff]
    %v46 = vld [vmem:[#allocation2 + $0x48] sm:$0xff]
    %v47 = vld [vmem:[#allocation2 + $0x50] sm:$0xff]
    %v48 = vld [vmem:[#allocation2 + $0x58] sm:$0xff]
    %v49 = vld [vmem:[#allocation2 + $0x60] sm:$0xff]
    %v50 = vld [vmem:[#allocation2 + $0x68] sm:$0xff]
    %v51 = vld [vmem:[#allocation2 + $0x70] sm:$0xff]
    %v52 = vld [vmem:[#allocation2 + $0x78] sm:$0xff]
    %v53 = vld [vmem:[%s3] sm:$0x1]
    %v55 = vperm.slane %v53, 0
    %57 = vmatpush.msra.mxu0 %v52
    %58 = vmatpush.msra.mxu0 %v51
    %59 = vmatpush.msra.mxu0 %v50
    %60 = vmatpush.msra.mxu0 %v49
    %61 = vmatpush.msra.mxu0 %v48
    %62 = vmatpush.msra.mxu0 %v47
    %63 = vmatpush.msra.mxu0 %v46
    %64 = vmatpush.msra.mxu0 %v45
    %65 = vmatpush.msra.mxu0 %v44
    %66 = vmatpush.msra.mxu0 %v43
    %67 = vmatpush.msra.mxu0 %v42
    %68 = vmatpush.msra.mxu0 %v41
    %69 = vmatpush.msra.mxu0 %v40
    %70 = vmatpush.msra.mxu0 %v39
    %71 = vmatpush.msra.mxu0 %v38
    %72 = vmatpush.msra.mxu0 %v37
    %73 = vmatmul.f32.gmra.mxu0 %v36
    %v74 = vpop.f32.mrf.mxu0
    %v75 = vadd.f32 %v55, %v74
    %76 = vdwg.mxu0
    %v77 = vmax.f32 %v75, 0.0
    %s78 = scalar_lea.vmem [#allocation2], 128
    %v79 = vld [vmem:[%s78] sm:$0xff]
    %v80 = vld [vmem:[%s78 + $0x8] sm:$0xff]
    %v81 = vld [vmem:[%s78 + $0x10] sm:$0xff]
    %v82 = vld [vmem:[%s78 + $0x18] sm:$0xff]
    %v83 = vld [vmem:[%s78 + $0x20] sm:$0xff]
    %v84 = vld [vmem:[%s78 + $0x28] sm:$0xff]
    %v85 = vld [vmem:[%s78 + $0x30] sm:$0xff]
    %v86 = vld [vmem:[%s78 + $0x38] sm:$0xff]
    %v87 = vld [vmem:[%s78 + $0x40] sm:$0xff]
    %v88 = vld [vmem:[%s78 + $0x48] sm:$0xff]
    %v89 = vld [vmem:[%s78 + $0x50] sm:$0xff]
    %v90 = vld [vmem:[%s78 + $0x58] sm:$0xff]
    %v91 = vld [vmem:[%s78 + $0x60] sm:$0xff]
    %v92 = vld [vmem:[%s78 + $0x68] sm:$0xff]
    %v93 = vld [vmem:[%s78 + $0x70] sm:$0xff]
    %v94 = vld [vmem:[%s78 + $0x78] sm:$0xff]
    %s95 = scalar_lea.vmem %s3, 1
    %v96 = vld [vmem:[%s95] sm:$0x1]
    %v98 = vperm.slane %v96, 0
    %100 = vmatpush.msra.mxu0 %v94
    %101 = vmatpush.msra.mxu0 %v93
    %102 = vmatpush.msra.mxu0 %v92
    %103 = vmatpush.msra.mxu0 %v91
    %104 = vmatpush.msra.mxu0 %v90
    %105 = vmatpush.msra.mxu0 %v89
    %106 = vmatpush.msra.mxu0 %v88
    %107 = vmatpush.msra.mxu0 %v87
    %108 = vmatpush.msra.mxu0 %v86
    %109 = vmatpush.msra.mxu0 %v85
    %110 = vmatpush.msra.mxu0 %v84
    %111 = vmatpush.msra.mxu0 %v83
    %112 = vmatpush.msra.mxu0 %v82
    %113 = vmatpush.msra.mxu0 %v81
    %114 = vmatpush.msra.mxu0 %v80
    %115 = vmatpush.msra.mxu0 %v79
    %116 = vmatmul.f32.gmra.mxu0 %v77
    %v117 = vpop.f32.mrf.mxu0
    %v118 = vadd.f32 %v98, %v117
    %119 = vdwg.mxu0
    %v120 = vmax.f32 %v118, 0.0
    %s121 = scalar_lea.vmem [#allocation2], 256
    %v122 = vld [vmem:[%s121] sm:$0xff]
    %v123 = vld [vmem:[%s121 + $0x8] sm:$0xff]
    %v124 = vld [vmem:[%s121 + $0x10] sm:$0xff]
    %v125 = vld [vmem:[%s121 + $0x18] sm:$0xff]
    %v126 = vld [vmem:[%s121 + $0x20] sm:$0xff]
    %v127 = vld [vmem:[%s121 + $0x28] sm:$0xff]
    %v128 = vld [vmem:[%s121 + $0x30] sm:$0xff]
    %v129 = vld [vmem:[%s121 + $0x38] sm:$0xff]
    %v130 = vld [vmem:[%s121 + $0x40] sm:$0xff]
    %v131 = vld [vmem:[%s121 + $0x48] sm:$0xff]
    %v132 = vld [vmem:[%s121 + $0x50] sm:$0xff]
    %v133 = vld [vmem:[%s121 + $0x58] sm:$0xff]
    %v134 = vld [vmem:[%s121 + $0x60] sm:$0xff]
    %v135 = vld [vmem:[%s121 + $0x68] sm:$0xff]
    %v136 = vld [vmem:[%s121 + $0x70] sm:$0xff]
    %v137 = vld [vmem:[%s121 + $0x78] sm:$0xff]
    %s138 = scalar_lea.vmem %s3, 2
    %v139 = vld [vmem:[%s138] sm:$0x1]
    %v141 = vperm.slane %v139, 0
    %143 = vmatpush.msra.mxu0 %v137
    %144 = vmatpush.msra.mxu0 %v136
    %145 = vmatpush.msra.mxu0 %v135
    %146 = vmatpush.msra.mxu0 %v134
    %147 = vmatpush.msra.mxu0 %v133
    %148 = vmatpush.msra.mxu0 %v132
    %149 = vmatpush.msra.mxu0 %v131
    %150 = vmatpush.msra.mxu0 %v130
    %151 = vmatpush.msra.mxu0 %v129
    %152 = vmatpush.msra.mxu0 %v128
    %153 = vmatpush.msra.mxu0 %v127
    %154 = vmatpush.msra.mxu0 %v126
    %155 = vmatpush.msra.mxu0 %v125
    %156 = vmatpush.msra.mxu0 %v124
    %157 = vmatpush.msra.mxu0 %v123
    %158 = vmatpush.msra.mxu0 %v122
    %159 = vmatmul.f32.gmra.mxu0 %v120
    %v160 = vpop.f32.mrf.mxu0
    %v161 = vadd.f32 %v141, %v160
    %162 = vdwg.mxu0
    %v163 = vmul.f32 %v161, 0.5
    %v164 = vmul.f32 %v163, 1.442695
    %v165 = vpow.pop %v164
    %v166 = vld [vmem:[%s1] sm:$0xff]
    %168 = vrot.lane.b32.xlu0 %v166, 16
    %v169 = vpop.permute.xlu0 %168
    %v171 = vmul.f32 %v165, %v169
    %173 = vrot.lane.b32.xlu0 %v171, 112
    %v174 = vpop.permute.xlu0 %173
    %v176 = vadd.f32 %v161, %v174
    %177 = vst [vmem:[%s5] sm:$0xff] 0.0
    %vm178 = vcmask 130048
    %179 = vst.msk [vmem:[%s5] sm:$0xff] %vm178, %v176
    %181 = vrot.lane.b32.xlu0 %v161, 16
    %v182 = vpop.permute.xlu0 %181
    %vm184 = vcmask 261248
    %185 = vst.msk [vmem:[%s5] sm:$0xff] %vm184, %v182
    %vm186 = vcmask 392448
    %187 = vst.msk [vmem:[%s5] sm:$0xff] %vm186, %v182
    %v188 = vld [vmem:[%s5] sm:$0xff]
    %s189 = scalar_lea.vmem [#allocation2], 384
    %v190 = vld [vmem:[%s189] sm:$0xff]
    %v191 = vld [vmem:[%s189 + $0x8] sm:$0xff]
    %v192 = vld [vmem:[%s189 + $0x10] sm:$0xff]
    %v193 = vld [vmem:[%s189 + $0x18] sm:$0xff]
    %v194 = vld [vmem:[%s189 + $0x20] sm:$0xff]
    %v195 = vld [vmem:[%s189 + $0x28] sm:$0xff]
    %v196 = vld [vmem:[%s189 + $0x30] sm:$0xff]
    %v197 = vld [vmem:[%s189 + $0x38] sm:$0xff]
    %v198 = vld [vmem:[%s189 + $0x40] sm:$0xff]
    %v199 = vld [vmem:[%s189 + $0x48] sm:$0xff]
    %v200 = vld [vmem:[%s189 + $0x50] sm:$0xff]
    %v201 = vld [vmem:[%s189 + $0x58] sm:$0xff]
    %v202 = vld [vmem:[%s189 + $0x60] sm:$0xff]
    %v203 = vld [vmem:[%s189 + $0x68] sm:$0xff]
    %v204 = vld [vmem:[%s189 + $0x70] sm:$0xff]
    %v205 = vld [vmem:[%s189 + $0x78] sm:$0xff]
    %s206 = scalar_lea.vmem %s3, 3
    %v207 = vld [vmem:[%s206] sm:$0x1]
    %v209 = vperm.slane %v207, 0
    %211 = vmatpush.msra.mxu0 %v205
    %212 = vmatpush.msra.mxu0 %v204
    %213 = vmatpush.msra.mxu0 %v203
    %214 = vmatpush.msra.mxu0 %v202
    %215 = vmatpush.msra.mxu0 %v201
    %216 = vmatpush.msra.mxu0 %v200
    %217 = vmatpush.msra.mxu0 %v199
    %218 = vmatpush.msra.mxu0 %v198
    %219 = vmatpush.msra.mxu0 %v197
    %220 = vmatpush.msra.mxu0 %v196
    %221 = vmatpush.msra.mxu0 %v195
    %222 = vmatpush.msra.mxu0 %v194
    %223 = vmatpush.msra.mxu0 %v193
    %224 = vmatpush.msra.mxu0 %v192
    %225 = vmatpush.msra.mxu0 %v191
    %226 = vmatpush.msra.mxu0 %v190
    %227 = vmatmul.f32.gmra.mxu0 %v188
    %v228 = vpop.f32.mrf.mxu0
    %v229 = vadd.f32 %v209, %v228
    %230 = vdwg.mxu0
    %v231 = vmax.f32 %v229, 0.0
    %s232 = scalar_lea.vmem [#allocation2], 512
    %v233 = vld [vmem:[%s232] sm:$0xff]
    %v234 = vld [vmem:[%s232 + $0x8] sm:$0xff]
    %v235 = vld [vmem:[%s232 + $0x10] sm:$0xff]
    %v236 = vld [vmem:[%s232 + $0x18] sm:$0xff]
    %v237 = vld [vmem:[%s232 + $0x20] sm:$0xff]
    %v238 = vld [vmem:[%s232 + $0x28] sm:$0xff]
    %v239 = vld [vmem:[%s232 + $0x30] sm:$0xff]
    %v240 = vld [vmem:[%s232 + $0x38] sm:$0xff]
    %v241 = vld [vmem:[%s232 + $0x40] sm:$0xff]
    %v242 = vld [vmem:[%s232 + $0x48] sm:$0xff]
    %v243 = vld [vmem:[%s232 + $0x50] sm:$0xff]
    %v244 = vld [vmem:[%s232 + $0x58] sm:$0xff]
    %v245 = vld [vmem:[%s232 + $0x60] sm:$0xff]
    %v246 = vld [vmem:[%s232 + $0x68] sm:$0xff]
    %v247 = vld [vmem:[%s232 + $0x70] sm:$0xff]
    %v248 = vld [vmem:[%s232 + $0x78] sm:$0xff]
    %s249 = scalar_lea.vmem %s3, 4
    %v250 = vld [vmem:[%s249] sm:$0x1]
    %v252 = vperm.slane %v250, 0
    %254 = vmatpush.msra.mxu0 %v248
    %255 = vmatpush.msra.mxu0 %v247
    %256 = vmatpush.msra.mxu0 %v246
    %257 = vmatpush.msra.mxu0 %v245
    %258 = vmatpush.msra.mxu0 %v244
    %259 = vmatpush.msra.mxu0 %v243
    %260 = vmatpush.msra.mxu0 %v242
    %261 = vmatpush.msra.mxu0 %v241
    %262 = vmatpush.msra.mxu0 %v240
    %263 = vmatpush.msra.mxu0 %v239
    %264 = vmatpush.msra.mxu0 %v238
    %265 = vmatpush.msra.mxu0 %v237
    %266 = vmatpush.msra.mxu0 %v236
    %267 = vmatpush.msra.mxu0 %v235
    %268 = vmatpush.msra.mxu0 %v234
    %269 = vmatpush.msra.mxu0 %v233
    %270 = vmatmul.f32.gmra.mxu0 %v231
    %v271 = vpop.f32.mrf.mxu0
    %v272 = vadd.f32 %v252, %v271
    %273 = vdwg.mxu0
    %v274 = vmax.f32 %v272, 0.0
    %s275 = scalar_lea.vmem [#allocation2], 640
    %v276 = vld [vmem:[%s275] sm:$0xff]
    %v277 = vld [vmem:[%s275 + $0x8] sm:$0xff]
    %v278 = vld [vmem:[%s275 + $0x10] sm:$0xff]
    %v279 = vld [vmem:[%s275 + $0x18] sm:$0xff]
    %v280 = vld [vmem:[%s275 + $0x20] sm:$0xff]
    %v281 = vld [vmem:[%s275 + $0x28] sm:$0xff]
    %v282 = vld [vmem:[%s275 + $0x30] sm:$0xff]
    %v283 = vld [vmem:[%s275 + $0x38] sm:$0xff]
    %v284 = vld [vmem:[%s275 + $0x40] sm:$0xff]
    %v285 = vld [vmem:[%s275 + $0x48] sm:$0xff]
    %v286 = vld [vmem:[%s275 + $0x50] sm:$0xff]
    %v287 = vld [vmem:[%s275 + $0x58] sm:$0xff]
    %v288 = vld [vmem:[%s275 + $0x60] sm:$0xff]
    %v289 = vld [vmem:[%s275 + $0x68] sm:$0xff]
    %v290 = vld [vmem:[%s275 + $0x70] sm:$0xff]
    %v291 = vld [vmem:[%s275 + $0x78] sm:$0xff]
    %s292 = scalar_lea.vmem %s3, 5
    %v293 = vld [vmem:[%s292] sm:$0x1]
    %v295 = vperm.slane %v293, 0
    %297 = vmatpush.msra.mxu0 %v291
    %298 = vmatpush.msra.mxu0 %v290
    %299 = vmatpush.msra.mxu0 %v289
    %300 = vmatpush.msra.mxu0 %v288
    %301 = vmatpush.msra.mxu0 %v287
    %302 = vmatpush.msra.mxu0 %v286
    %303 = vmatpush.msra.mxu0 %v285
    %304 = vmatpush.msra.mxu0 %v284
    %305 = vmatpush.msra.mxu0 %v283
    %306 = vmatpush.msra.mxu0 %v282
    %307 = vmatpush.msra.mxu0 %v281
    %308 = vmatpush.msra.mxu0 %v280
    %309 = vmatpush.msra.mxu0 %v279
    %310 = vmatpush.msra.mxu0 %v278
    %311 = vmatpush.msra.mxu0 %v277
    %312 = vmatpush.msra.mxu0 %v276
    %313 = vmatmul.f32.gmra.mxu0 %v274
    %v314 = vpop.f32.mrf.mxu0
    %v315 = vadd.f32 %v295, %v314
    %316 = vdwg.mxu0
    %317 = vst [vmem:[#allocation5] sm:$0xff] %v315
    // Predicated region
    $region22: #{vae_forward.1} parent=1 // pred_check
      _
    $region23: #{vae_forward.1} parent=1 // pred_check_branch
      %319 = sbr.rel (0) target = $region25
    $region24: #{vae_forward.1} parent=1 // pred_region
      %321 = vsyncadd [#allocation4], 0
      %s323 = sshll.u32 [#allocation5], 4
      %s324 = int_to_ptr.vmem [resolvable:$true] %s323
      %s325 = sshll.u32 %s4, 4
      %s326 = int_to_ptr.hbm [resolvable:$true] %s325
      %328 = dma.vmem_to_hbm [thread:$0]  %s324, 128, %s326, [#allocation4]
    $region25: #{vae_forward.1} parent=1 // pred_fallthru
      _
    // Predicated region
    $region26: #{vae_forward.1} parent=1 // pred_check
      _
    $region27: #{vae_forward.1} parent=1 // pred_check_branch
      %330 = sbr.rel (0) target = $region29
    $region28: #{vae_forward.1} parent=1 // pred_region
      _
    $region29: #{vae_forward.1} parent=1 // pred_fallthru
      _
    // Predicated region
    $region30: #{vae_forward.1} parent=1 // pred_check
      _
    $region31: #{vae_forward.1} parent=1 // pred_check_branch
      %332 = sbr.rel (0) target = $region33
    $region32: #{vae_forward.1} parent=1 // pred_region
      %334 = dma.done [#allocation4], 128
    $region33: #{vae_forward.1} parent=1 // pred_fallthru
      _
    // Predicated region
    $region34: #{vae_forward.1} parent=1 // pred_check
      _
    $region35: #{vae_forward.1} parent=1 // pred_check_branch
      %336 = sbr.rel (0) target = $region37
    $region36: #{vae_forward.1} parent=1 // pred_region
      _
    $region37: #{vae_forward.1} parent=1 // pred_fallthru
      _
    %337 = vsyncpa [#allocation3], 1
    %338 = vsyncpa [#allocation4], 1

</llo_original>
